<compile_context>
chip_gen: v7x
topology: tpu7x:2x2x1
jax: 0.10.0
libtpu: 0.0.40
codegen_flags: <defaults>
</compile_context>

<pallas_src>
import jax
import jax.numpy as jnp
from jax.experimental import pallas as pl
from jax.experimental.pallas import tpu as pltpu


def bahdanau_attn_kernel(q_ref, wq_t_ref, we_ref, pk_ref, v_ref, mask_ref,
                         ctx_ref, alpha_ref):
    f32 = jnp.float32
    bblk, _, q_dim = q_ref.shape

    # query projection on the MXU: [Bblk, Q] @ [Q, H] -> [Bblk, H]
    q = q_ref[...].reshape(bblk, q_dim).astype(f32)
    q_h = jnp.dot(q, wq_t_ref[...].astype(f32), preferred_element_type=f32)

    # energies: sum_h( tanh(q_h + proj_key) * We ) -> [Bblk, M]
    t = jnp.tanh(q_h[:, None, :] + pk_ref[...].astype(f32))        # [Bblk, M, H]
    scores = jnp.sum(t * we_ref[...].astype(f32), axis=-1)         # [Bblk, M] lane reduce

    # masked softmax over M (lane axis); finite -1e30 avoids NaN on all-masked rows
    mask = mask_ref[...].reshape(bblk, -1)                         # [Bblk, M]
    scores = jnp.where(mask == 0, jnp.float32(-1e30), scores)
    m = jnp.max(scores, axis=-1, keepdims=True)
    e = jnp.exp(scores - m)
    s = jnp.sum(e, axis=-1, keepdims=True)
    alphas = (e / s)[:, None, :]                                   # [Bblk, 1, M]
    alpha_ref[...] = alphas.astype(alpha_ref.dtype)

    # context on the MXU: [Bblk, 1, M] @ [Bblk, M, V] -> [Bblk, 1, V]
    ctx = jnp.einsum('bkm,bmv->bkv', alphas.astype(v_ref.dtype), v_ref[...],
                     preferred_element_type=f32)
    ctx_ref[...] = ctx.astype(ctx_ref.dtype)


def bahdanau_attention(query, proj_key, value, mask, wq, we, *, block_b=None):
    """query:[B,1,Q]  proj_key:[B,M,H]  value:[B,M,V]  mask:[B,1,M] (or [B,M])
       wq:[H,Q] = query_layer.weight    we:[1,H] = energy_layer.weight
       Returns (context [B,1,V], alphas [B,1,M])."""
    B, _, Q = query.shape
    _, M, H = proj_key.shape
    V = value.shape[-1]

    wq_t = jnp.transpose(wq)                                   # [Q, H]
    we_r = jnp.reshape(we, (1, H))
    mask_i = jnp.reshape(mask, (B, 1, M)).astype(jnp.int32)    # lane-dense [B,1,M]

    # Batch block size: largest Bblk (<=32) whose double-buffered working set
    # stays ~<= 24 MiB (safe on v5e/v6e 128 MiB and v7x 64 MiB VMEM).
    per_b = (M * H * jnp.dtype(proj_key.dtype).itemsize
             + M * V * jnp.dtype(value.dtype).itemsize
             + Q * jnp.dtype(query.dtype).itemsize
             + V * jnp.dtype(query.dtype).itemsize
             + 2 * M * 4)
    if block_b is None:
        block_b = max(1, min(B, 32, (12 * 1024 * 1024) // max(per_b, 1)))
    Bblk = int(block_b)
    B_pad = -(-B // Bblk) * Bblk
    if B_pad != B:
        padb = B_pad - B
        query = jnp.pad(query, ((0, padb), (0, 0), (0, 0)))
        proj_key = jnp.pad(proj_key, ((0, padb), (0, 0), (0, 0)))
        value = jnp.pad(value, ((0, padb), (0, 0), (0, 0)))
        mask_i = jnp.pad(mask_i, ((0, padb), (0, 0), (0, 0)))

    vmem_limit = int(min(48 * 1024 * 1024,
                         max(2 * Bblk * per_b + 4 * 1024 * 1024,
                             24 * 1024 * 1024)))

    grid_spec = pltpu.PrefetchScalarGridSpec(
        num_scalar_prefetch=0,
        grid=(B_pad // Bblk,),
        in_specs=[
            pl.BlockSpec((Bblk, 1, Q), lambda b: (b, 0, 0)),   # query
            pl.BlockSpec((Q, H), lambda b: (0, 0)),            # wq_t (shared weight)
            pl.BlockSpec((1, H), lambda b: (0, 0)),            # we   (shared weight)
            pl.BlockSpec((Bblk, M, H), lambda b: (b, 0, 0)),   # proj_key
            pl.BlockSpec((Bblk, M, V), lambda b: (b, 0, 0)),   # value
            pl.BlockSpec((Bblk, 1, M), lambda b: (b, 0, 0)),   # mask (lane-dense)
        ],
        out_specs=[
            pl.BlockSpec((Bblk, 1, V), lambda b: (b, 0, 0)),   # context
            pl.BlockSpec((Bblk, 1, M), lambda b: (b, 0, 0)),   # alphas (lane-dense)
        ],
    )

    context, alphas = pl.pallas_call(
        bahdanau_attn_kernel,
        out_shape=(
            jax.ShapeDtypeStruct((B_pad, 1, V), query.dtype),
            jax.ShapeDtypeStruct((B_pad, 1, M), jnp.float32),
        ),
        grid_spec=grid_spec,
        compiler_params=pltpu.CompilerParams(
            dimension_semantics=("parallel",),
            vmem_limit_bytes=vmem_limit),
    )(query, wq_t, we_r, proj_key, value, mask_i)

    if B_pad != B:
        context = context[:B]
        alphas = alphas[:B]
    return context, alphas


if __name__ == "__main__":
    key = jax.random.PRNGKey(0)
    B, M, hidden = 2, 8, 32
    Q = hidden          # query_size = hidden_size
    H = hidden
    V = 2 * hidden      # value dim = 2*hidden (bi-RNN encoder outputs)

    k1, k2, k3, k4, k5, k6 = jax.random.split(key, 6)
    query = jax.random.normal(k1, (B, 1, Q), jnp.float32)
    proj_key = jax.random.normal(k2, (B, M, H), jnp.float32)
    value = jax.random.normal(k3, (B, M, V), jnp.float32)

    # mask [B,1,M]: 1 = valid token, 0 = padding
    lengths = jnp.array([M, M - 3])
    mask = (jnp.arange(M)[None, None, :] < lengths[:, None, None]).astype(jnp.int32)

    # deterministic parameter init (nn.Linear weights, bias=False)
    wq = jax.random.normal(k4, (H, Q), jnp.float32) * 0.1          # query_layer.weight
    we = jax.random.normal(k5, (1, H), jnp.float32) * 0.1          # energy_layer.weight
    wk = jax.random.normal(k6, (H, 2 * hidden), jnp.float32) * 0.1 # key_layer.weight (unused in forward)

    context, alphas = bahdanau_attention(query, proj_key, value, mask, wq, we)
    jax.block_until_ready((context, alphas))

    # pure-JAX reference for correctness
    qh = query @ wq.T                                            # [B,1,H]
    sc = jnp.tanh(qh + proj_key) @ we.T                          # [B,M,1]
    sc = jnp.transpose(sc, (0, 2, 1))                            # [B,1,M]
    sc = jnp.where(mask == 0, -jnp.inf, sc)
    a_ref = jax.nn.softmax(sc, axis=-1)
    c_ref = a_ref @ value

    assert context.shape == (B, 1, V) and alphas.shape == (B, 1, M)
    assert jnp.allclose(context, c_ref, atol=1e-4, rtol=1e-4)
    assert jnp.allclose(alphas, a_ref, atol=1e-4, rtol=1e-4)
    print("KERNEL_OK")
</pallas_src>

<mosaic_0001>
module attributes {stable_mosaic.version = 11 : i64} {
  func.func @bahdanau_attn_kernel(%arg0: i32, %arg1: memref<2x1x32xf32, #tpu.memory_space<vmem>>, %arg2: memref<32x32xf32, #tpu.memory_space<vmem>>, %arg3: memref<1x32xf32, #tpu.memory_space<vmem>>, %arg4: memref<2x8x32xf32, #tpu.memory_space<vmem>>, %arg5: memref<2x8x64xf32, #tpu.memory_space<vmem>>, %arg6: memref<2x1x8xi32, #tpu.memory_space<vmem>>, %arg7: memref<2x1x64xf32, #tpu.memory_space<vmem>>, %arg8: memref<2x1x8xf32, #tpu.memory_space<vmem>>) attributes {dimension_semantics = [#tpu.dimension_semantics<parallel>], iteration_bounds = array<i64: 1>, scalar_prefetch = 0 : i64, scratch_operands = 0 : i64, tpu.core_type = #tpu.core_type<tc>, window_params = [{transform_indices = @transform_0, window_bounds = array<i64: 2, 1, 32>}, {pipeline_mode = #tpu.pipeline_mode<synchronous>, transform_indices = @transform_1, window_bounds = array<i64: 32, 32>}, {pipeline_mode = #tpu.pipeline_mode<synchronous>, transform_indices = @transform_2, window_bounds = array<i64: 1, 32>}, {transform_indices = @transform_3, window_bounds = array<i64: 2, 8, 32>}, {transform_indices = @transform_4, window_bounds = array<i64: 2, 8, 64>}, {transform_indices = @transform_5, window_bounds = array<i64: 2, 1, 8>}, {transform_indices = @transform_6, window_bounds = array<i64: 2, 1, 64>}, {transform_indices = @transform_7, window_bounds = array<i64: 2, 1, 8>}]} {
    %c0 = arith.constant 0 : index
    %c0_0 = arith.constant 0 : index
    %c0_1 = arith.constant 0 : index
    %0 = vector.load %arg1[%c0, %c0_0, %c0_1] : memref<2x1x32xf32, #tpu.memory_space<vmem>>, vector<2x1x32xf32>
    %1 = vector.shape_cast %0 : vector<2x1x32xf32> to vector<2x32xf32>
    %c0_2 = arith.constant 0 : index
    %c0_3 = arith.constant 0 : index
    %2 = vector.load %arg2[%c0_2, %c0_3] : memref<32x32xf32, #tpu.memory_space<vmem>>, vector<32x32xf32>
    %cst = arith.constant dense<0.000000e+00> : vector<2x32xf32>
    %3 = tpu.matmul %1, %2, %cst {dimension_numbers = #tpu.dot_dimension_numbers<[1], [0], [0], [1], [0, 0, 1, 1], [], []>} : vector<2x32xf32>, vector<32x32xf32>, vector<2x32xf32> -> vector<2x32xf32>
    %4 = vector.shape_cast %3 : vector<2x32xf32> to vector<2x1x32xf32>
    %c0_4 = arith.constant 0 : index
    %c0_5 = arith.constant 0 : index
    %c0_6 = arith.constant 0 : index
    %5 = vector.load %arg4[%c0_4, %c0_5, %c0_6] : memref<2x8x32xf32, #tpu.memory_space<vmem>>, vector<2x8x32xf32>
    %6 = vector.broadcast %4 : vector<2x1x32xf32> to vector<2x8x32xf32>
    %7 = arith.addf %6, %5 : vector<2x8x32xf32>
    %8 = math.tanh %7 : vector<2x8x32xf32>
    %c0_7 = arith.constant 0 : index
    %c0_8 = arith.constant 0 : index
    %9 = vector.load %arg3[%c0_7, %c0_8] : memref<1x32xf32, #tpu.memory_space<vmem>>, vector<1x32xf32>
    %10 = vector.shape_cast %9 : vector<1x32xf32> to vector<1x1x32xf32>
    %11 = vector.broadcast %10 : vector<1x1x32xf32> to vector<2x8x32xf32>
    %12 = arith.mulf %8, %11 : vector<2x8x32xf32>
    %cst_9 = arith.constant dense<0.000000e+00> : vector<2x8xf32>
    %13 = vector.multi_reduction <add>, %12, %cst_9 [2] : vector<2x8x32xf32> to vector<2x8xf32>
    %c0_10 = arith.constant 0 : index
    %c0_11 = arith.constant 0 : index
    %c0_12 = arith.constant 0 : index
    %14 = vector.load %arg6[%c0_10, %c0_11, %c0_12] : memref<2x1x8xi32, #tpu.memory_space<vmem>>, vector<2x1x8xi32>
    %15 = vector.shape_cast %14 : vector<2x1x8xi32> to vector<2x8xi32>
    %c0_i32 = arith.constant 0 : i32
    %16 = vector.broadcast %c0_i32 : i32 to vector<2x8xi32>
    %17 = arith.cmpi eq, %15, %16 : vector<2x8xi32>
    %cst_13 = arith.constant -1.000000e+30 : f32
    %18 = vector.broadcast %cst_13 : f32 to vector<2x8xf32>
    %19 = arith.select %17, %18, %13 : vector<2x8xi1>, vector<2x8xf32>
    %cst_14 = arith.constant dense<0xFF800000> : vector<2xf32>
    %20 = vector.multi_reduction <maximumf>, %19, %cst_14 [1] : vector<2x8xf32> to vector<2xf32>
    %21 = vector.shape_cast %20 : vector<2xf32> to vector<2x1xf32>
    %22 = vector.broadcast %21 : vector<2x1xf32> to vector<2x8xf32>
    %23 = arith.subf %19, %22 : vector<2x8xf32>
    %24 = math.exp %23 : vector<2x8xf32>
    %cst_15 = arith.constant dense<0.000000e+00> : vector<2xf32>
    %25 = vector.multi_reduction <add>, %24, %cst_15 [1] : vector<2x8xf32> to vector<2xf32>
    %26 = vector.shape_cast %25 : vector<2xf32> to vector<2x1xf32>
    %27 = vector.broadcast %26 : vector<2x1xf32> to vector<2x8xf32>
    %28 = arith.divf %24, %27 : vector<2x8xf32>
    %29 = vector.shape_cast %28 : vector<2x8xf32> to vector<2x1x8xf32>
    %c0_16 = arith.constant 0 : index
    %c0_17 = arith.constant 0 : index
    %c0_18 = arith.constant 0 : index
    %30 = vector.load %arg8[%c0_16, %c0_17, %c0_18] : memref<2x1x8xf32, #tpu.memory_space<vmem>>, vector<2x1x8xf32>
    tpu.vector_store %arg8[%c0_16, %c0_17, %c0_18], %29 {strides = array<i32>} : memref<2x1x8xf32, #tpu.memory_space<vmem>>, vector<2x1x8xf32>,
    %c0_19 = arith.constant 0 : index
    %c0_20 = arith.constant 0 : index
    %c0_21 = arith.constant 0 : index
    %31 = vector.load %arg5[%c0_19, %c0_20, %c0_21] : memref<2x8x64xf32, #tpu.memory_space<vmem>>, vector<2x8x64xf32>
    "tpu.trace_start"() <{level = 10 : i32, message = "bkm,bmv->bkv"}> : () -> ()
    %cst_22 = arith.constant dense<0.000000e+00> : vector<2x1x64xf32>
    %32 = tpu.matmul %29, %31, %cst_22 {dimension_numbers = #tpu.dot_dimension_numbers<[2], [1], [1], [2], [0, 0, 0, 1, 1, 2], [0], [0]>} : vector<2x1x8xf32>, vector<2x8x64xf32>, vector<2x1x64xf32> -> vector<2x1x64xf32>
    "tpu.trace_stop"() : () -> ()
    %c0_23 = arith.constant 0 : index
    %c0_24 = arith.constant 0 : index
    %c0_25 = arith.constant 0 : index
    %33 = vector.load %arg7[%c0_23, %c0_24, %c0_25] : memref<2x1x64xf32, #tpu.memory_space<vmem>>, vector<2x1x64xf32>
    tpu.vector_store %arg7[%c0_23, %c0_24, %c0_25], %32 {strides = array<i32>} : memref<2x1x64xf32, #tpu.memory_space<vmem>>, vector<2x1x64xf32>,
    return
  }
  func.func @transform_0(%arg0: i32) -> (i32, i32, i32) {
    %c0_i32 = arith.constant 0 : i32
    %c0_i32_0 = arith.constant 0 : i32
    %c0_i32_1 = arith.constant 0 : i32
    return %arg0, %c0_i32, %c0_i32_0 : i32, i32, i32
  }
  func.func @transform_1(%arg0: i32) -> (i32, i32) {
    %c0_i32 = arith.constant 0 : i32
    %c0_i32_0 = arith.constant 0 : i32
    %c0_i32_1 = arith.constant 0 : i32
    return %c0_i32, %c0_i32_0 : i32, i32
  }
  func.func @transform_2(%arg0: i32) -> (i32, i32) {
    %c0_i32 = arith.constant 0 : i32
    %c0_i32_0 = arith.constant 0 : i32
    %c0_i32_1 = arith.constant 0 : i32
    return %c0_i32, %c0_i32_0 : i32, i32
  }
  func.func @transform_3(%arg0: i32) -> (i32, i32, i32) {
    %c0_i32 = arith.constant 0 : i32
    %c0_i32_0 = arith.constant 0 : i32
    %c0_i32_1 = arith.constant 0 : i32
    return %arg0, %c0_i32, %c0_i32_0 : i32, i32, i32
  }
  func.func @transform_4(%arg0: i32) -> (i32, i32, i32) {
    %c0_i32 = arith.constant 0 : i32
    %c0_i32_0 = arith.constant 0 : i32
    %c0_i32_1 = arith.constant 0 : i32
    return %arg0, %c0_i32, %c0_i32_0 : i32, i32, i32
  }
  func.func @transform_5(%arg0: i32) -> (i32, i32, i32) {
    %c0_i32 = arith.constant 0 : i32
    %c0_i32_0 = arith.constant 0 : i32
    %c0_i32_1 = arith.constant 0 : i32
    return %arg0, %c0_i32, %c0_i32_0 : i32, i32, i32
  }
  func.func @transform_6(%arg0: i32) -> (i32, i32, i32) {
    %c0_i32 = arith.constant 0 : i32
    %c0_i32_0 = arith.constant 0 : i32
    %c0_i32_1 = arith.constant 0 : i32
    return %arg0, %c0_i32, %c0_i32_0 : i32, i32, i32
  }
  func.func @transform_7(%arg0: i32) -> (i32, i32, i32) {
    %c0_i32 = arith.constant 0 : i32
    %c0_i32_0 = arith.constant 0 : i32
    %c0_i32_1 = arith.constant 0 : i32
    return %arg0, %c0_i32, %c0_i32_0 : i32, i32, i32
  }
}

</mosaic_0001>

<llo_original>
// kernel: tpu_custom_call.1
$region0: #{tpu_custom_call.1}
  #allocation0 [shape = 'u32[]', space=smem, size = 0x4, offset = 0x4, fixed_abs, tag = 'smem constant byte address 0x4 - core index']
  #allocation1 [shape = 'u32[144,128]{1,0:T(1,128)}', space=vmem, size = 0x12000, scoped, tag = 'internal scratch']
  %s0 = inlined_call_operand.hbm [shape: f32[2,1,32], index: 0, kind: input, shape index: {}]
  %s1 = inlined_call_operand.hbm [shape: f32[32,32], index: 1, kind: input, shape index: {}]
  %s2 = inlined_call_operand.vmem [shape: f32[1,32], index: 2, kind: input, shape index: {}]
  %s3 = inlined_call_operand.hbm [shape: f32[2,8,32], index: 3, kind: input, shape index: {}]
  %s4 = inlined_call_operand.hbm [shape: f32[2,8,64], index: 4, kind: input, shape index: {}]
  %s5 = inlined_call_operand.vmem [shape: s32[2,1,8], index: 5, kind: input, shape index: {}]
  %s6 = inlined_call_operand.hbm [shape: f32[2,1,64], index: 6, kind: output, shape index: {0}]
  %s7 = inlined_call_operand.hbm [shape: f32[2,1,8], index: 7, kind: output, shape index: {1}]
  %8 = xla_tuple %s6, %s7
  %s9 = sld [smem:[#allocation0]]
  $region58: #{tpu_custom_call.1} parent=0
    _
  %s11 = ssub.s32 1, %s9
  %s12 = scalar_select 0, %s11, %s9
  $region1: #{tpu_custom_call.1} parent=0
    #allocation2 [shape = 'u8[1024]{0}', space=vmem, size = 0x400, scoped, tag = 'input window, operand 0, single buffered']
    #allocation3 [shape = 's32[1]{0}', space=sflag, size = 0x4, scoped, tag = 'scoped memory for tpu_custom_call.1']
    #allocation4 [shape = 's32[1]{0}', space=sflag, size = 0x4, scoped, tag = 'scoped memory for tpu_custom_call.1']
    #allocation5 [shape = 'u8[16384]{0}', space=vmem, size = 0x4000, scoped, tag = 'input window, operand 1, single buffered']
    #allocation6 [shape = 's32[1]{0}', space=sflag, size = 0x4, scoped, tag = 'scoped memory for tpu_custom_call.1']
    #allocation7 [shape = 'u8[8192]{0}', space=vmem, size = 0x2000, scoped, tag = 'input window, operand 3, single buffered']
    #allocation8 [shape = 'u8[8192]{0}', space=vmem, size = 0x2000, scoped, tag = 'input window, operand 4, single buffered']
    #allocation9 [shape = 's32[1]{0}', space=sflag, size = 0x4, scoped, tag = 'scoped memory for tpu_custom_call.1']
    #allocation10 [shape = 'u8[1024]{0}', space=vmem, size = 0x400, scoped, tag = 'output window, operand 0, single buffered']
    #allocation11 [shape = 'u8[1024]{0}', space=vmem, size = 0x400, scoped, tag = 'output window, operand 1, single buffered']
    #allocation12 [shape = 's32[1]{0}', space=sflag, size = 0x4, scoped, tag = 'scoped memory for tpu_custom_call.1']
    %13 = vsyncpa [#allocation3], 0
    %14 = vsyncpa [#allocation6], 0
    %15 = vsyncpa [#allocation9], 0
    %16 = vsyncpa [#allocation4], 0
    %17 = vsyncpa [#allocation12], 0
    // Predicated region
    $region2: #{tpu_custom_call.1} parent=1 // pred_check
      _
    $region3: #{tpu_custom_call.1} parent=1 // pred_check_branch
      %19 = sbr.rel (0) target = $region5
    $region4: #{tpu_custom_call.1} parent=1 // pred_region
      %s21 = ssub.s32 32, 32
      %22 = vsyncadd [#allocation3], %s21
      %s23 = sshll.u32 [#allocation2], 4
      %s24 = int_to_ptr.vmem [resolvable:$true] %s23
      %29 = dma.hbm_to_vmem [thread:$0]  %s0, 32, %s24, [#allocation3], 16, 16, 1
    $region5: #{tpu_custom_call.1} parent=1 // pred_fallthru
      _
    // Predicated region
    $region6: #{tpu_custom_call.1} parent=1 // pred_check
      _
    $region7: #{tpu_custom_call.1} parent=1 // pred_check_branch
      %31 = sbr.rel (0) target = $region9
    $region8: #{tpu_custom_call.1} parent=1 // pred_region
      %s33 = ssub.s32 512, 512
      %34 = vsyncadd [#allocation6], %s33
      %s35 = sshll.u32 [#allocation5], 4
      %s36 = int_to_ptr.vmem [resolvable:$true] %s35
      %41 = dma.hbm_to_vmem [thread:$0]  %s1, 512, %s36, [#allocation6], 128, 128, 8
    $region9: #{tpu_custom_call.1} parent=1 // pred_fallthru
      _
    // Predicated region
    $region10: #{tpu_custom_call.1} parent=1 // pred_check
      _
    $region11: #{tpu_custom_call.1} parent=1 // pred_check_branch
      %43 = sbr.rel (0) target = $region13
    $region12: #{tpu_custom_call.1} parent=1 // pred_region
      _
    $region13: #{tpu_custom_call.1} parent=1 // pred_fallthru
      _
    // Predicated region
    $region14: #{tpu_custom_call.1} parent=1 // pred_check
      _
    $region15: #{tpu_custom_call.1} parent=1 // pred_check_branch
      %45 = sbr.rel (0) target = $region17
    $region16: #{tpu_custom_call.1} parent=1 // pred_region
      %s47 = ssub.s32 256, 256
      %48 = vsyncadd [#allocation6], %s47
      %s49 = sshll.u32 [#allocation7], 4
      %s50 = int_to_ptr.vmem [resolvable:$true] %s49
      %55 = dma.hbm_to_vmem [thread:$0]  %s3, 256, %s50, [#allocation6], 128, 128, 8
    $region17: #{tpu_custom_call.1} parent=1 // pred_fallthru
      _
    // Predicated region
    $region18: #{tpu_custom_call.1} parent=1 // pred_check
      _
    $region19: #{tpu_custom_call.1} parent=1 // pred_check_branch
      %57 = sbr.rel (0) target = $region21
    $region20: #{tpu_custom_call.1} parent=1 // pred_region
      %s59 = ssub.s32 256, 256
      %60 = vsyncadd [#allocation9], %s59
      %s61 = sshll.u32 [#allocation8], 4
      %s62 = int_to_ptr.vmem [resolvable:$true] %s61
      %67 = dma.hbm_to_vmem [thread:$0]  %s4, 256, %s62, [#allocation9], 128, 128, 8
    $region21: #{tpu_custom_call.1} parent=1 // pred_fallthru
      _
    // Predicated region
    $region22: #{tpu_custom_call.1} parent=1 // pred_check
      _
    $region23: #{tpu_custom_call.1} parent=1 // pred_check_branch
      %69 = sbr.rel (0) target = $region25
    $region24: #{tpu_custom_call.1} parent=1 // pred_region
      _
    $region25: #{tpu_custom_call.1} parent=1 // pred_fallthru
      _
    // Predicated region
    $region26: #{tpu_custom_call.1} parent=1 // pred_check
      _
    $region27: #{tpu_custom_call.1} parent=1 // pred_check_branch
      %71 = sbr.rel (0) target = $region29
    $region28: #{tpu_custom_call.1} parent=1 // pred_region
      %72 = dma.done [#allocation3], 32
    $region29: #{tpu_custom_call.1} parent=1 // pred_fallthru
      _
    // Predicated region
    $region30: #{tpu_custom_call.1} parent=1 // pred_check
      _
    $region31: #{tpu_custom_call.1} parent=1 // pred_check_branch
      %74 = sbr.rel (0) target = $region33
    $region32: #{tpu_custom_call.1} parent=1 // pred_region
      %75 = dma.done [#allocation6], 512
    $region33: #{tpu_custom_call.1} parent=1 // pred_fallthru
      _
    // Predicated region
    $region34: #{tpu_custom_call.1} parent=1 // pred_check
      _
    $region35: #{tpu_custom_call.1} parent=1 // pred_check_branch
      %77 = sbr.rel (0) target = $region37
    $region36: #{tpu_custom_call.1} parent=1 // pred_region
      %78 = dma.done [#allocation6], 256
    $region37: #{tpu_custom_call.1} parent=1 // pred_fallthru
      _
    // Predicated region
    $region38: #{tpu_custom_call.1} parent=1 // pred_check
      _
    $region39: #{tpu_custom_call.1} parent=1 // pred_check_branch
      %80 = sbr.rel (0) target = $region41
    $region40: #{tpu_custom_call.1} parent=1 // pred_region
      %81 = dma.done [#allocation9], 256
    $region41: #{tpu_custom_call.1} parent=1 // pred_fallthru
      _
    %v82 = vld [vmem:[#allocation2] sm:$0x1]
    %v83 = vld [vmem:[#allocation2 + $0x1] sm:$0x1]
    %v84 = vld [vmem:[#allocation5] sm:$0xff]
    %v85 = vld [vmem:[#allocation5 + $0x8] sm:$0xff]
    %v86 = vld [vmem:[#allocation5 + $0x10] sm:$0xff]
    %v87 = vld [vmem:[#allocation5 + $0x18] sm:$0xff]
    %v90 = vcombine.low %v82, %v83
    %v92 = vunpack.c.l.s4 1966171168
    %v93 = vunpack.c.0.s8 %v92
    %v94 = vlaneseq
    %v95 = vshrl.u32 %v94, 7
    %v96 = vsub.s32 %v93, %v95
    %v97 = vrot.slane %v90, %v96
    %v99 = vunpack.c.l.s4 1966171168
    %v100 = vunpack.c.0.s8 %v99
    %v101 = vlaneseq
    %v102 = vshrl.u32 %v101, 7
    %v103 = vsub.s32 %v100, %v102
    %v104 = vrot.slane %v97, %v103
    %vm105 = vcmask 261120
    %v106 = vsel %vm105, %v104, 0
    %108 = vmatprep.subr.mxu0 0.0
    %109 = vmatpush1.msra.mxu0 %v84
    %110 = vmatprep.subr.mxu0 0.0
    %111 = vmatpush1.msra.mxu0 %v85
    %112 = vmatprep.subr.mxu0 0.0
    %113 = vmatpush1.msra.mxu0 %v86
    %114 = vmatprep.subr.mxu0 0.0
    %115 = vmatpush1.msra.mxu0 %v87
    %116 = vmatprep.subr.mxu0 0.0
    %117 = vmatpush1.msra.mxu0 0.0
    %118 = vmatprep.subr.mxu0 0.0
    %119 = vmatpush1.msra.mxu0 0.0
    %120 = vmatprep.subr.mxu0 0.0
    %121 = vmatpush1.msra.mxu0 0.0
    %122 = vmatprep.subr.mxu0 0.0
    %123 = vmatpush1.msra.mxu0 0.0
    %124 = vmatprep.subr.mxu0 0.0
    %125 = vmatpush1.msra.mxu0 0.0
    %126 = vmatprep.subr.mxu0 0.0
    %127 = vmatpush1.msra.mxu0 0.0
    %128 = vmatprep.subr.mxu0 0.0
    %129 = vmatpush1.msra.mxu0 0.0
    %130 = vmatprep.subr.mxu0 0.0
    %131 = vmatpush1.msra.mxu0 0.0
    %132 = vmatprep.subr.mxu0 0.0
    %133 = vmatpush1.msra.mxu0 0.0
    %134 = vmatprep.subr.mxu0 0.0
    %135 = vmatpush1.msra.mxu0 0.0
    %136 = vmatprep.subr.mxu0 0.0
    %137 = vmatpush1.msra.mxu0 0.0
    %138 = vmatprep.subr.mxu0 0.0
    %139 = vmatpush1.msra.mxu0 0.0
    %140 = vmatprep.subr.mxu0 0.0
    %141 = vmatpush1.msra.mxu0 0.0
    %142 = vmatprep.subr.mxu0 0.0
    %143 = vmatpush1.msra.mxu0 0.0
    %144 = vmatprep.subr.mxu0 0.0
    %145 = vmatpush1.msra.mxu0 0.0
    %146 = vmatprep.subr.mxu0 0.0
    %147 = vmatpush1.msra.mxu0 0.0
    %148 = vmatprep.subr.mxu0 0.0
    %149 = vmatpush1.msra.mxu0 0.0
    %150 = vmatprep.subr.mxu0 0.0
    %151 = vmatpush1.msra.mxu0 0.0
    %152 = vmatprep.subr.mxu0 0.0
    %153 = vmatpush1.msra.mxu0 0.0
    %154 = vmatprep.subr.mxu0 0.0
    %155 = vmatpush1.msra.mxu0 0.0
    %156 = vmatprep.subr.mxu0 0.0
    %157 = vmatpush1.msra.mxu0 0.0
    %158 = vmatprep.subr.mxu0 0.0
    %159 = vmatpush1.msra.mxu0 0.0
    %160 = vmatprep.subr.mxu0 0.0
    %161 = vmatpush1.msra.mxu0 0.0
    %162 = vmatprep.subr.mxu0 0.0
    %163 = vmatpush1.msra.mxu0 0.0
    %164 = vmatprep.subr.mxu0 0.0
    %165 = vmatpush1.msra.mxu0 0.0
    %166 = vmatprep.subr.mxu0 0.0
    %167 = vmatpush1.msra.mxu0 0.0
    %168 = vmatprep.subr.mxu0 0.0
    %169 = vmatpush1.msra.mxu0 0.0
    %170 = vmatprep.subr.mxu0 0.0
    %171 = vmatpush1.msra.mxu0 0.0
    %172 = vmatprep.mubr.f32.mxu0 0.0
    %173 = vmatmul.mubr.f32.gmra.mrb[0].mxu0 %v106
    %v174 = vpop.f32.mrb[0].mxu0
    %v175 = vadd.f32 0.0, %v174
    %v176 = vpop.f32.mrb[0].mxu0
    %177 = vdwg.mxu0
    %v180 = vunpack.c.l.s4 1966171168
    %v181 = vunpack.c.0.s8 %v180
    %v182 = vlaneseq
    %v183 = vshrl.u32 %v182, 7
    %v184 = vsub.s32 %v181, %v183
    %v185 = vrot.slane %v175, %v184
    %v186 = vcombine.high %v185, %v185
    %v188 = vunpack.c.l.s4 1966171168
    %v189 = vunpack.c.0.s8 %v188
    %v190 = vlaneseq
    %v191 = vshrl.u32 %v190, 7
    %v192 = vsub.s32 %v189, %v191
    %v193 = vrot.slane %v185, %v192
    %v195 = vunpack.c.l.s4 1966171168
    %v196 = vunpack.c.0.s8 %v195
    %v197 = vlaneseq
    %v198 = vshrl.u32 %v197, 7
    %v199 = vsub.s32 %v196, %v198
    %v200 = vrot.slane %v186, %v199
    %v201 = vld [vmem:[#allocation7] sm:$0xff]
    %v202 = vld [vmem:[#allocation7 + $0x8] sm:$0xff]
    %v203 = vlaneseq
    %v204 = vshrl.u32 %v203, 7
    %v205 = vsub.s32 0, %v204
    %v206 = vrot.slane %v193, %v205
    %v207 = vlaneseq
    %v208 = vshrl.u32 %v207, 7
    %v209 = vsub.s32 0, %v208
    %v210 = vrot.slane %v200, %v209
    %v213 = vadd.f32 %v206, %v201
    %v214 = vadd.f32 %v210, %v202
    %v215 = vtanh.pop %v213
    %v216 = vtanh.pop %v214
    %v217 = vld [vmem:[%s2] sm:$0x1]
    %v219 = vlaneseq
    %v220 = vshrl.u32 %v219, 7
    %v221 = vsub.s32 0, %v220
    %v222 = vrot.slane %v217, %v221
    %v224 = vmul.f32 %v215, %v222
    %v225 = vmul.f32 %v216, %v222
    %v226 = vsel %vm105, %v224, 0.0
    %227 = vadd.xlane.f32.xlu0 %v226
    %v228 = vpop.xlane.xlu0 %227
    %v229 = vsel %vm105, %v225, 0.0
    %230 = vadd.xlane.f32.xlu0 %v229
    %v231 = vpop.xlane.xlu0 %230
    %v232 = vld [vmem:[%s5] sm:$0x1]
    %v233 = vld [vmem:[%s5 + $0x1] sm:$0x1]
    %vm234 = vcmp.eq.s32.totalorder %v232, 0
    %vm235 = vcmp.eq.s32.totalorder %v233, 0
    %v238 = vlaneseq
    %v239 = vshrl.u32 %v238, 7
    %v240 = vsub.s32 0, %v239
    %v241 = vrot.slane %v228, %v240
    %v242 = vlaneseq
    %v243 = vshrl.u32 %v242, 7
    %v244 = vsub.s32 1, %v243
    %v245 = vrot.slane %v228, %v244
    %v246 = vlaneseq
    %v247 = vshrl.u32 %v246, 7
    %v248 = vsub.s32 2, %v247
    %v249 = vrot.slane %v228, %v248
    %v250 = vlaneseq
    %v251 = vshrl.u32 %v250, 7
    %v252 = vsub.s32 3, %v251
    %v253 = vrot.slane %v228, %v252
    %v254 = vlaneseq
    %v255 = vshrl.u32 %v254, 7
    %v256 = vsub.s32 4, %v255
    %v257 = vrot.slane %v228, %v256
    %v258 = vlaneseq
    %v259 = vshrl.u32 %v258, 7
    %v260 = vsub.s32 5, %v259
    %v261 = vrot.slane %v228, %v260
    %v262 = vlaneseq
    %v263 = vshrl.u32 %v262, 7
    %v264 = vsub.s32 6, %v263
    %v265 = vrot.slane %v228, %v264
    %v266 = vlaneseq
    %v267 = vshrl.u32 %v266, 7
    %v268 = vsub.s32 7, %v267
    %v269 = vrot.slane %v228, %v268
    %v270 = vlaneseq
    %v271 = vshrl.u32 %v270, 7
    %v272 = vsub.s32 0, %v271
    %v273 = vrot.slane %v231, %v272
    %v274 = vlaneseq
    %v275 = vshrl.u32 %v274, 7
    %v276 = vsub.s32 1, %v275
    %v277 = vrot.slane %v231, %v276
    %v278 = vlaneseq
    %v279 = vshrl.u32 %v278, 7
    %v280 = vsub.s32 2, %v279
    %v281 = vrot.slane %v231, %v280
    %v282 = vlaneseq
    %v283 = vshrl.u32 %v282, 7
    %v284 = vsub.s32 3, %v283
    %v285 = vrot.slane %v231, %v284
    %v286 = vlaneseq
    %v287 = vshrl.u32 %v286, 7
    %v288 = vsub.s32 4, %v287
    %v289 = vrot.slane %v231, %v288
    %v290 = vlaneseq
    %v291 = vshrl.u32 %v290, 7
    %v292 = vsub.s32 5, %v291
    %v293 = vrot.slane %v231, %v292
    %v294 = vlaneseq
    %v295 = vshrl.u32 %v294, 7
    %v296 = vsub.s32 6, %v295
    %v297 = vrot.slane %v231, %v296
    %v298 = vlaneseq
    %v299 = vshrl.u32 %v298, 7
    %v300 = vsub.s32 7, %v299
    %v301 = vrot.slane %v231, %v300
    %v302 = vcombine.low %v241, %v245
    %v303 = vcombine.low %v249, %v253
    %v304 = vcombine.low %v257, %v261
    %v305 = vcombine.low %v265, %v269
    %v307 = vunpack.c.l.s4 1966171168
    %v308 = vunpack.c.0.s8 %v307
    %v309 = vlaneseq
    %v310 = vshrl.u32 %v309, 7
    %v311 = vsub.s32 %v308, %v310
    %v312 = vrot.slane %v302, %v311
    %v314 = vunpack.c.l.s4 1966171168
    %v315 = vunpack.c.0.s8 %v314
    %v316 = vlaneseq
    %v317 = vshrl.u32 %v316, 7
    %v318 = vsub.s32 %v315, %v317
    %v319 = vrot.slane %v303, %v318
    %v321 = vunpack.c.l.s4 1966171168
    %v322 = vunpack.c.0.s8 %v321
    %v323 = vlaneseq
    %v324 = vshrl.u32 %v323, 7
    %v325 = vsub.s32 %v322, %v324
    %v326 = vrot.slane %v304, %v325
    %v328 = vunpack.c.l.s4 1966171168
    %v329 = vunpack.c.0.s8 %v328
    %v330 = vlaneseq
    %v331 = vshrl.u32 %v330, 7
    %v332 = vsub.s32 %v329, %v331
    %v333 = vrot.slane %v305, %v332
    %v334 = vcombine.low %v312, %v319
    %v335 = vcombine.low %v326, %v333
    %v337 = vunpack.c.l.s4 1966171168
    %v338 = vunpack.c.0.s8 %v337
    %v339 = vlaneseq
    %v340 = vshrl.u32 %v339, 7
    %v341 = vsub.s32 %v338, %v340
    %v342 = vrot.slane %v334, %v341
    %v344 = vunpack.c.l.s4 1966171168
    %v345 = vunpack.c.0.s8 %v344
    %v346 = vlaneseq
    %v347 = vshrl.u32 %v346, 7
    %v348 = vsub.s32 %v345, %v347
    %v349 = vrot.slane %v335, %v348
    %v350 = vcombine.low %v342, %v349
    %v351 = vcombine.low %v273, %v277
    %v352 = vcombine.low %v281, %v285
    %v353 = vcombine.low %v289, %v293
    %v354 = vcombine.low %v297, %v301
    %v356 = vunpack.c.l.s4 1966171168
    %v357 = vunpack.c.0.s8 %v356
    %v358 = vlaneseq
    %v359 = vshrl.u32 %v358, 7
    %v360 = vsub.s32 %v357, %v359
    %v361 = vrot.slane %v351, %v360
    %v363 = vunpack.c.l.s4 1966171168
    %v364 = vunpack.c.0.s8 %v363
    %v365 = vlaneseq
    %v366 = vshrl.u32 %v365, 7
    %v367 = vsub.s32 %v364, %v366
    %v368 = vrot.slane %v352, %v367
    %v370 = vunpack.c.l.s4 1966171168
    %v371 = vunpack.c.0.s8 %v370
    %v372 = vlaneseq
    %v373 = vshrl.u32 %v372, 7
    %v374 = vsub.s32 %v371, %v373
    %v375 = vrot.slane %v353, %v374
    %v377 = vunpack.c.l.s4 1966171168
    %v378 = vunpack.c.0.s8 %v377
    %v379 = vlaneseq
    %v380 = vshrl.u32 %v379, 7
    %v381 = vsub.s32 %v378, %v380
    %v382 = vrot.slane %v354, %v381
    %v383 = vcombine.low %v361, %v368
    %v384 = vcombine.low %v375, %v382
    %v386 = vunpack.c.l.s4 1966171168
    %v387 = vunpack.c.0.s8 %v386
    %v388 = vlaneseq
    %v389 = vshrl.u32 %v388, 7
    %v390 = vsub.s32 %v387, %v389
    %v391 = vrot.slane %v383, %v390
    %v393 = vunpack.c.l.s4 1966171168
    %v394 = vunpack.c.0.s8 %v393
    %v395 = vlaneseq
    %v396 = vshrl.u32 %v395, 7
    %v397 = vsub.s32 %v394, %v396
    %v398 = vrot.slane %v384, %v397
    %v399 = vcombine.low %v391, %v398
    %400 = vset.pattern.permute.xlu0 0
    %401 = vperm.xlu0 %400, %v350
    %v402 = vpop.permute.xlu0 %401
    %403 = vset.pattern.permute.xlu0 0
    %404 = vperm.xlu0 %403, %v399
    %v405 = vpop.permute.xlu0 %404
    %v406 = vlaneseq
    %v407 = vand.u32 %v406, 127
    %v408 = vlaneseq
    %v409 = vshrl.u32 %v408, 7
    %v410 = vsub.s32 %v407, %v409
    %v411 = vrot.slane %v402, %v410
    %v412 = vlaneseq
    %v413 = vshrl.u32 %v412, 7
    %v414 = vsub.s32 %v407, %v413
    %v415 = vrot.slane %v405, %v414
    %v417 = vunpack.c.l.s4 1966171168
    %v418 = vunpack.c.0.s8 %v417
    %v419 = vlaneseq
    %v420 = vshrl.u32 %v419, 7
    %v421 = vsub.s32 %v418, %v420
    %v422 = vrot.slane %v411, %v421
    %v424 = vunpack.c.l.s4 1966171168
    %v425 = vunpack.c.0.s8 %v424
    %v426 = vlaneseq
    %v427 = vshrl.u32 %v426, 7
    %v428 = vsub.s32 %v425, %v427
    %v429 = vrot.slane %v422, %v428
    %v431 = vunpack.c.l.s4 1966171168
    %v432 = vunpack.c.0.s8 %v431
    %v433 = vlaneseq
    %v434 = vshrl.u32 %v433, 7
    %v435 = vsub.s32 %v432, %v434
    %v436 = vrot.slane %v415, %v435
    %v438 = vunpack.c.l.s4 1966171168
    %v439 = vunpack.c.0.s8 %v438
    %v440 = vlaneseq
    %v441 = vshrl.u32 %v440, 7
    %v442 = vsub.s32 %v439, %v441
    %v443 = vrot.slane %v436, %v442
    %v446 = vsel %vm234, -1e+30, %v429
    %v447 = vsel %vm235, -1e+30, %v443
    %v450 = vcombine.low %v446, %v447
    %v452 = vunpack.c.l.s4 1966171168
    %v453 = vunpack.c.0.s8 %v452
    %v454 = vlaneseq
    %v455 = vshrl.u32 %v454, 7
    %v456 = vsub.s32 %v453, %v455
    %v457 = vrot.slane %v450, %v456
    %v459 = vunpack.c.l.s4 1966171168
    %v460 = vunpack.c.0.s8 %v459
    %v461 = vlaneseq
    %v462 = vshrl.u32 %v461, 7
    %v463 = vsub.s32 %v460, %v462
    %v464 = vrot.slane %v457, %v463
    %vm466 = vcmask 58368
    %v467 = vsel %vm466, %v464, -inf
    %468 = vmax.xlane.f32.xlu0 %v467
    %v469 = vpop.xlane.xlu0 %468
    %v471 = vlaneseq
    %v472 = vshrl.u32 %v471, 7
    %v473 = vsub.s32 0, %v472
    %v474 = vrot.slane %v469, %v473
    %v475 = vlaneseq
    %v476 = vshrl.u32 %v475, 7
    %v477 = vsub.s32 1, %v476
    %v478 = vrot.slane %v469, %v477
    %v481 = vsub.f32 %v446, %v474
    %v482 = vsub.f32 %v447, %v478
    %v483 = vmul.f32 %v481, 1.442695
    %v484 = vpow.pop %v483
    %v485 = vmul.f32 %v482, 1.442695
    %v486 = vpow.pop %v485
    %v489 = vcombine.low %v484, %v486
    %v491 = vunpack.c.l.s4 1966171168
    %v492 = vunpack.c.0.s8 %v491
    %v493 = vlaneseq
    %v494 = vshrl.u32 %v493, 7
    %v495 = vsub.s32 %v492, %v494
    %v496 = vrot.slane %v489, %v495
    %v498 = vunpack.c.l.s4 1966171168
    %v499 = vunpack.c.0.s8 %v498
    %v500 = vlaneseq
    %v501 = vshrl.u32 %v500, 7
    %v502 = vsub.s32 %v499, %v501
    %v503 = vrot.slane %v496, %v502
    %v505 = vsel %vm466, %v503, 0.0
    %506 = vadd.xlane.f32.xlu0 %v505
    %v507 = vpop.xlane.xlu0 %506
    %v509 = vlaneseq
    %v510 = vshrl.u32 %v509, 7
    %v511 = vsub.s32 0, %v510
    %v512 = vrot.slane %v507, %v511
    %v513 = vlaneseq
    %v514 = vshrl.u32 %v513, 7
    %v515 = vsub.s32 1, %v514
    %v516 = vrot.slane %v507, %v515
    %v519 = vrcp.pop %v512
    %v520 = vmul.f32 %v484, %v519
    %v521 = vrcp.pop %v516
    %v522 = vmul.f32 %v486, %v521
    %vm523 = vcmask 57344
    %524 = vst.msk [vmem:[#allocation11] sm:$0x1] %vm523, %v520
    %525 = vst.msk [vmem:[#allocation11 + $0x1] sm:$0x1] %vm523, %v522
    %v526 = vld [vmem:[#allocation8] sm:$0xff]
    %v527 = vld [vmem:[#allocation8 + $0x8] sm:$0xff]
    %vm528 = vcmask 64512
    %v530 = vsel %vm528, %v520, 0
    %532 = vmatprep.subr.mxu0 0.0
    %533 = vmatpush1.msra.mxu0 %v526
    %534 = vmatprep.subr.mxu0 0.0
    %535 = vmatpush1.msra.mxu0 0.0
    %536 = vmatprep.subr.mxu0 0.0
    %537 = vmatpush1.msra.mxu0 0.0
    %538 = vmatprep.subr.mxu0 0.0
    %539 = vmatpush1.msra.mxu0 0.0
    %540 = vmatprep.subr.mxu0 0.0
    %541 = vmatpush1.msra.mxu0 0.0
    %542 = vmatprep.subr.mxu0 0.0
    %543 = vmatpush1.msra.mxu0 0.0
    %544 = vmatprep.subr.mxu0 0.0
    %545 = vmatpush1.msra.mxu0 0.0
    %546 = vmatprep.subr.mxu0 0.0
    %547 = vmatpush1.msra.mxu0 0.0
    %548 = vmatprep.subr.mxu0 0.0
    %549 = vmatpush1.msra.mxu0 0.0
    %550 = vmatprep.subr.mxu0 0.0
    %551 = vmatpush1.msra.mxu0 0.0
    %552 = vmatprep.subr.mxu0 0.0
    %553 = vmatpush1.msra.mxu0 0.0
    %554 = vmatprep.subr.mxu0 0.0
    %555 = vmatpush1.msra.mxu0 0.0
    %556 = vmatprep.subr.mxu0 0.0
    %557 = vmatpush1.msra.mxu0 0.0
    %558 = vmatprep.subr.mxu0 0.0
    %559 = vmatpush1.msra.mxu0 0.0
    %560 = vmatprep.subr.mxu0 0.0
    %561 = vmatpush1.msra.mxu0 0.0
    %562 = vmatprep.subr.mxu0 0.0
    %563 = vmatpush1.msra.mxu0 0.0
    %564 = vmatprep.subr.mxu0 0.0
    %565 = vmatpush1.msra.mxu0 0.0
    %566 = vmatprep.subr.mxu0 0.0
    %567 = vmatpush1.msra.mxu0 0.0
    %568 = vmatprep.subr.mxu0 0.0
    %569 = vmatpush1.msra.mxu0 0.0
    %570 = vmatprep.subr.mxu0 0.0
    %571 = vmatpush1.msra.mxu0 0.0
    %572 = vmatprep.subr.mxu0 0.0
    %573 = vmatpush1.msra.mxu0 0.0
    %574 = vmatprep.subr.mxu0 0.0
    %575 = vmatpush1.msra.mxu0 0.0
    %576 = vmatprep.subr.mxu0 0.0
    %577 = vmatpush1.msra.mxu0 0.0
    %578 = vmatprep.subr.mxu0 0.0
    %579 = vmatpush1.msra.mxu0 0.0
    %580 = vmatprep.subr.mxu0 0.0
    %581 = vmatpush1.msra.mxu0 0.0
    %582 = vmatprep.subr.mxu0 0.0
    %583 = vmatpush1.msra.mxu0 0.0
    %584 = vmatprep.subr.mxu0 0.0
    %585 = vmatpush1.msra.mxu0 0.0
    %586 = vmatprep.subr.mxu0 0.0
    %587 = vmatpush1.msra.mxu0 0.0
    %588 = vmatprep.subr.mxu0 0.0
    %589 = vmatpush1.msra.mxu0 0.0
    %590 = vmatprep.subr.mxu0 0.0
    %591 = vmatpush1.msra.mxu0 0.0
    %592 = vmatprep.subr.mxu0 0.0
    %593 = vmatpush1.msra.mxu0 0.0
    %594 = vmatprep.subr.mxu0 0.0
    %595 = vmatpush1.msra.mxu0 0.0
    %596 = vmatprep.mubr.f32.mxu0 0.0
    %597 = vmatmul.mubr.f32.gmra.mrb[0].mxu0 %v530
    %v598 = vpop.f32.mrb[0].mxu0
    %v599 = vadd.f32 0.0, %v598
    %v600 = vpop.f32.mrb[0].mxu0
    %601 = vdwg.mxu0
    %v603 = vsel %vm528, %v522, 0
    %605 = vmatprep.subr.mxu0 0.0
    %606 = vmatpush1.msra.mxu0 %v527
    %607 = vmatprep.subr.mxu0 0.0
    %608 = vmatpush1.msra.mxu0 0.0
    %609 = vmatprep.subr.mxu0 0.0
    %610 = vmatpush1.msra.mxu0 0.0
    %611 = vmatprep.subr.mxu0 0.0
    %612 = vmatpush1.msra.mxu0 0.0
    %613 = vmatprep.subr.mxu0 0.0
    %614 = vmatpush1.msra.mxu0 0.0
    %615 = vmatprep.subr.mxu0 0.0
    %616 = vmatpush1.msra.mxu0 0.0
    %617 = vmatprep.subr.mxu0 0.0
    %618 = vmatpush1.msra.mxu0 0.0
    %619 = vmatprep.subr.mxu0 0.0
    %620 = vmatpush1.msra.mxu0 0.0
    %621 = vmatprep.subr.mxu0 0.0
    %622 = vmatpush1.msra.mxu0 0.0
    %623 = vmatprep.subr.mxu0 0.0
    %624 = vmatpush1.msra.mxu0 0.0
    %625 = vmatprep.subr.mxu0 0.0
    %626 = vmatpush1.msra.mxu0 0.0
    %627 = vmatprep.subr.mxu0 0.0
    %628 = vmatpush1.msra.mxu0 0.0
    %629 = vmatprep.subr.mxu0 0.0
    %630 = vmatpush1.msra.mxu0 0.0
    %631 = vmatprep.subr.mxu0 0.0
    %632 = vmatpush1.msra.mxu0 0.0
    %633 = vmatprep.subr.mxu0 0.0
    %634 = vmatpush1.msra.mxu0 0.0
    %635 = vmatprep.subr.mxu0 0.0
    %636 = vmatpush1.msra.mxu0 0.0
    %637 = vmatprep.subr.mxu0 0.0
    %638 = vmatpush1.msra.mxu0 0.0
    %639 = vmatprep.subr.mxu0 0.0
    %640 = vmatpush1.msra.mxu0 0.0
    %641 = vmatprep.subr.mxu0 0.0
    %642 = vmatpush1.msra.mxu0 0.0
    %643 = vmatprep.subr.mxu0 0.0
    %644 = vmatpush1.msra.mxu0 0.0
    %645 = vmatprep.subr.mxu0 0.0
    %646 = vmatpush1.msra.mxu0 0.0
    %647 = vmatprep.subr.mxu0 0.0
    %648 = vmatpush1.msra.mxu0 0.0
    %649 = vmatprep.subr.mxu0 0.0
    %650 = vmatpush1.msra.mxu0 0.0
    %651 = vmatprep.subr.mxu0 0.0
    %652 = vmatpush1.msra.mxu0 0.0
    %653 = vmatprep.subr.mxu0 0.0
    %654 = vmatpush1.msra.mxu0 0.0
    %655 = vmatprep.subr.mxu0 0.0
    %656 = vmatpush1.msra.mxu0 0.0
    %657 = vmatprep.subr.mxu0 0.0
    %658 = vmatpush1.msra.mxu0 0.0
    %659 = vmatprep.subr.mxu0 0.0
    %660 = vmatpush1.msra.mxu0 0.0
    %661 = vmatprep.subr.mxu0 0.0
    %662 = vmatpush1.msra.mxu0 0.0
    %663 = vmatprep.subr.mxu0 0.0
    %664 = vmatpush1.msra.mxu0 0.0
    %665 = vmatprep.subr.mxu0 0.0
    %666 = vmatpush1.msra.mxu0 0.0
    %667 = vmatprep.subr.mxu0 0.0
    %668 = vmatpush1.msra.mxu0 0.0
    %669 = vmatprep.mubr.f32.mxu0 0.0
    %670 = vmatmul.mubr.f32.gmra.mrb[0].mxu0 %v603
    %v671 = vpop.f32.mrb[0].mxu0
    %v672 = vadd.f32 0.0, %v671
    %v673 = vpop.f32.mrb[0].mxu0
    %674 = vdwg.mxu0
    %vm675 = vcmask 516096
    %676 = vst.msk [vmem:[#allocation10] sm:$0x1] %vm675, %v599
    %677 = vst.msk [vmem:[#allocation10 + $0x1] sm:$0x1] %vm675, %v672
    // Predicated region
    $region42: #{tpu_custom_call.1} parent=1 // pred_check
      _
    $region43: #{tpu_custom_call.1} parent=1 // pred_check_branch
      %679 = sbr.rel (0) target = $region45
    $region44: #{tpu_custom_call.1} parent=1 // pred_region
      %s681 = ssub.s32 32, 32
      %682 = vsyncadd [#allocation4], %s681
      %s683 = sshll.u32 [#allocation10], 4
      %s684 = int_to_ptr.vmem [resolvable:$true] %s683
      %689 = dma.vmem_to_hbm [thread:$0]  %s684, 32, %s6, [#allocation4], 16, 16, 1
    $region45: #{tpu_custom_call.1} parent=1 // pred_fallthru
      _
    // Predicated region
    $region46: #{tpu_custom_call.1} parent=1 // pred_check
      _
    $region47: #{tpu_custom_call.1} parent=1 // pred_check_branch
      %691 = sbr.rel (0) target = $region49
    $region48: #{tpu_custom_call.1} parent=1 // pred_region
      %s693 = ssub.s32 32, 32
      %694 = vsyncadd [#allocation12], %s693
      %s695 = sshll.u32 [#allocation11], 4
      %s696 = int_to_ptr.vmem [resolvable:$true] %s695
      %701 = dma.vmem_to_hbm [thread:$0]  %s696, 32, %s7, [#allocation12], 16, 16, 1
    $region49: #{tpu_custom_call.1} parent=1 // pred_fallthru
      _
    // Predicated region
    $region50: #{tpu_custom_call.1} parent=1 // pred_check
      _
    $region51: #{tpu_custom_call.1} parent=1 // pred_check_branch
      %703 = sbr.rel (0) target = $region53
    $region52: #{tpu_custom_call.1} parent=1 // pred_region
      %704 = dma.done [#allocation4], 32
    $region53: #{tpu_custom_call.1} parent=1 // pred_fallthru
      _
    // Predicated region
    $region54: #{tpu_custom_call.1} parent=1 // pred_check
      _
    $region55: #{tpu_custom_call.1} parent=1 // pred_check_branch
      %706 = sbr.rel (0) target = $region57
    $region56: #{tpu_custom_call.1} parent=1 // pred_region
      %707 = dma.done [#allocation12], 32
    $region57: #{tpu_custom_call.1} parent=1 // pred_fallthru
      _
    %708 = vsyncpa [#allocation3], 1
    %709 = vsyncpa [#allocation6], 1
    %710 = vsyncpa [#allocation9], 1
    %711 = vsyncpa [#allocation4], 1
    %712 = vsyncpa [#allocation12], 1

</llo_original>
